<compile_context>
chip_gen: v7x
topology: tpu7x:2x2x1
jax: 0.10.0
libtpu: 0.0.40
codegen_flags: <defaults>
</compile_context>

<pallas_src>
import functools

import jax
import jax.numpy as jnp
from jax import lax
from jax.experimental import pallas as pl
from jax.experimental.pallas import tpu as pltpu


# ----------------------------------------------------------------------------
# Pallas kernels
# ----------------------------------------------------------------------------
def _add_pos_kernel(x_ref, pos_ref, o_ref):
    """out[bt, c, hw] = x[bt, c, hw] + pos[0, c, hw]   (NCHW, lane dim = HW)."""
    o_ref[...] = (x_ref[...] + pos_ref[...]).astype(o_ref.dtype)


def _proj_kernel(x_ref, wlT_ref, pospT_ref, o_ref):
    """out[i, p, hw] = sum_c W^T[p, c] * x[i, c, hw] + pos_proj^T[p, hw].

    Canonical MXU orientation (contract LHS-last with RHS-first); the output
    lane dim is HW, so stores are full-width.  x stays in NCHW -- no HBM
    transpose of the activations is ever materialized.
    """
    wlT = wlT_ref[...]          # (proj_dim, dim)  -- hoisted out of the loop
    pospT = pospT_ref[...]      # (proj_dim, hw_t)

    def body(i, carry):
        y = lax.dot_general(
            wlT, x_ref[i],
            dimension_numbers=(((1,), (0,)), ((), ())),   # contract channel dim
            preferred_element_type=jnp.float32)
        o_ref[i] = (y + pospT).astype(o_ref.dtype)
        return carry

    lax.fori_loop(0, x_ref.shape[0], body, None, unroll=True)


# ----------------------------------------------------------------------------
# Tiling helpers
# ----------------------------------------------------------------------------
def _tpu_generation_params():
    kind = ""
    try:
        dev = jax.devices()[0]
        if dev.platform == "tpu":
            kind = dev.device_kind.lower()
    except Exception:
        pass
    if "v7" in kind or "tpu7" in kind or "7x" in kind:
        # v7x: 64 MiB VMEM, 2 TensorCores/chip -> smaller blocks, keep >=2
        # parallel grid steps so both cores get work; cap scoped VMEM < 64 MiB.
        return {"target_bytes": 2 << 20, "min_steps": 2,
                "vmem_limit": 48 * 1024 * 1024}
    # v5e / v6e: single TensorCore, 128 MiB VMEM -> fewer, larger (~4 MiB)
    # blocks.  Explicit limit also lifts v5e's small 16 MiB scoped default.
    return {"target_bytes": 4 << 20, "min_steps": 1,
            "vmem_limit": 64 * 1024 * 1024}


def _largest_divisor_leq(n, cap):
    cap = int(max(1, min(n, cap)))
    for d in range(cap, 0, -1):
        if n % d == 0:
            return d
    return 1


def _choose_tiling(batch, hw_padded, bytes_per_batch_per_lane, target_bytes,
                   min_steps):
    """Pick (bt, hw_t): bt divides batch, hw_t is a 128-multiple dividing
    hw_padded.  Block (in + out) bytes ~= bt * hw_t * bytes_per_batch_per_lane
    targeted at `target_bytes`; keep >= min_steps grid steps (v7x megacore)."""
    n_lane_tiles = hw_padded // 128
    per_batch_full = bytes_per_batch_per_lane * hw_padded

    bt = _largest_divisor_leq(batch, max(1, target_bytes // max(1, per_batch_full)))
    hw_t = hw_padded
    if per_batch_full > target_bytes and n_lane_tiles > 1:
        # One batch item at full HW exceeds the target -> tile the lane axis.
        tgt_tiles = max(1, target_bytes // max(1, bytes_per_batch_per_lane * 128))
        hw_t = 128 * _largest_divisor_leq(n_lane_tiles, tgt_tiles)
        bt = 1

    steps = (batch // bt) * (hw_padded // hw_t)
    while steps < min_steps and (bt > 1 or hw_t > 128):
        if bt > 1:
            bt = _largest_divisor_leq(batch, bt - 1)
        else:
            hw_t = 128 * _largest_divisor_leq(n_lane_tiles, (hw_t // 128) - 1)
        steps = (batch // bt) * (hw_padded // hw_t)
    return bt, hw_t


def _pad_lanes(a, hw, hw_padded):
    if hw_padded == hw:
        return a
    pad = [(0, 0)] * (a.ndim - 1) + [(0, hw_padded - hw)]
    return jnp.pad(a, pad)


# ----------------------------------------------------------------------------
# Wrapper
# ----------------------------------------------------------------------------
def build_grid(size, bounds=(-1.0, 1.0)):
    """Same as CoordinatePositionEmbed.build_grid (add_inverse=False)."""
    h, w = size
    lin_h = jnp.linspace(bounds[0], bounds[1], h)
    lin_w = jnp.linspace(bounds[0], bounds[1], w)
    gh, gw = jnp.meshgrid(lin_h, lin_w, indexing="ij")   # each (H, W)
    return jnp.stack([gh, gw], axis=0)                   # (2, H, W)


@functools.partial(jax.jit, static_argnames=("has_proj",))
def coordinate_position_embed(x, grid, conv_w, conv_b, lin_w, lin_b, has_proj):
    """
    x:      (B, dim, H, W)   NCHW, matching the PyTorch module
    grid:   (2, H, W)
    conv_w: (dim, 2)  (1x1 conv kernel squeezed)
    conv_b: (dim,)
    lin_w:  (proj_dim, dim)  (only used when has_proj)
    lin_b:  (proj_dim,)
    Returns (B, dim, H, W) if not has_proj else (B, H*W, proj_dim).
    """
    B, dim, H, W = x.shape
    HW = H * W
    HWp = max(128, ((HW + 127) // 128) * 128)            # lane-dense padding
    itemsize = x.dtype.itemsize
    gen = _tpu_generation_params()

    # Batch-invariant position embedding, computed ONCE (tiny: dim x HW).
    grid2 = grid.reshape(2, HW)                                            # (2, HW)
    pos_nchw = jnp.dot(conv_w, grid2,
                       preferred_element_type=jnp.float32) + conv_b[:, None]
    pos_nchw = _pad_lanes(pos_nchw, HW, HWp)                               # (dim, HWp)

    x3 = _pad_lanes(x.reshape(B, dim, HW), HW, HWp)       # NCHW, no transpose

    if not has_proj:
        # bytes / batch item / lane column: x streamed in + out streamed back.
        bt, hw_t = _choose_tiling(B, HWp, 2 * dim * itemsize,
                                  gen["target_bytes"], gen["min_steps"])
        pos3 = pos_nchw[None]                                              # (1, dim, HWp)
        cost = pl.CostEstimate(
            flops=B * dim * HWp,
            transcendentals=0,
            bytes_accessed=2 * B * dim * HWp * itemsize + dim * HWp * 4)
        out = pl.pallas_call(
            _add_pos_kernel,
            out_shape=jax.ShapeDtypeStruct((B, dim, HWp), x.dtype),
            grid_spec=pltpu.PrefetchScalarGridSpec(
                num_scalar_prefetch=0,
                grid=(B // bt, HWp // hw_t),
                in_specs=[
                    pl.BlockSpec((bt, dim, hw_t), lambda b, h: (b, 0, h)),  # x
                    pl.BlockSpec((1, dim, hw_t), lambda b, h: (0, 0, h)),   # pos
                ],
                out_specs=pl.BlockSpec((bt, dim, hw_t), lambda b, h: (b, 0, h)),
            ),
            compiler_params=pltpu.CompilerParams(
                dimension_semantics=("parallel", "parallel"),
                vmem_limit_bytes=gen["vmem_limit"]),
            cost_estimate=cost,
        )(x3, pos3)
        return out[:, :, :HW].reshape(B, dim, H, W)        # free reshape to NCHW

    # -------- projection path: fold pos through the linear once --------------
    proj_dim = lin_w.shape[0]
    wlT = lin_w                                                            # (proj_dim, dim)
    pos_projT = jnp.dot(lin_w, pos_nchw,
                        preferred_element_type=jnp.float32) + lin_b[:, None]  # (proj_dim, HWp)

    # bytes / batch item / lane column: x in (dim) + out (proj_dim).
    bt, hw_t = _choose_tiling(B, HWp, (dim + proj_dim) * itemsize,
                              gen["target_bytes"], gen["min_steps"])
    cost = pl.CostEstimate(
        flops=2 * B * HWp * dim * proj_dim + B * proj_dim * HWp,
        transcendentals=0,
        bytes_accessed=(B * dim * HWp * itemsize + B * proj_dim * HWp * itemsize
                        + dim * proj_dim * 4 + proj_dim * HWp * 4))

    out = pl.pallas_call(
        _proj_kernel,
        out_shape=jax.ShapeDtypeStruct((B, proj_dim, HWp), x.dtype),
        grid_spec=pltpu.PrefetchScalarGridSpec(
            num_scalar_prefetch=0,
            grid=(B // bt, HWp // hw_t),
            in_specs=[
                pl.BlockSpec((bt, dim, hw_t), lambda b, h: (b, 0, h)),     # x (NCHW)
                pl.BlockSpec((proj_dim, dim), lambda b, h: (0, 0)),        # W^T (resident)
                pl.BlockSpec((proj_dim, hw_t), lambda b, h: (0, h)),       # W pos + b
            ],
            out_specs=pl.BlockSpec((bt, proj_dim, hw_t), lambda b, h: (b, 0, h)),
        ),
        compiler_params=pltpu.CompilerParams(
            dimension_semantics=("parallel", "parallel"),
            vmem_limit_bytes=gen["vmem_limit"]),
        cost_estimate=cost,
    )(x3, wlT, pos_projT)

    # Layout plumbing only: kernel writes lane-dense (B, proj_dim, HW); the
    # module's contract is channels-last (B, HW, proj_dim).  A channel-first
    # consumer could skip this transpose entirely.
    return jnp.transpose(out[:, :, :HW], (0, 2, 1))


# ----------------------------------------------------------------------------
# Reference (pure JAX) for sanity checking
# ----------------------------------------------------------------------------
def reference(x, grid, conv_w, conv_b, lin_w, lin_b, has_proj):
    B, dim, H, W = x.shape
    pos = jnp.einsum("ci,ihw->chw", conv_w, grid) + conv_b[:, None, None]
    y = x + pos[None]
    if has_proj:
        y = y.reshape(B, dim, H * W)
        y = jnp.transpose(y, (0, 2, 1))
        y = y @ jnp.transpose(lin_w, (1, 0)) + lin_b
    return y


# ----------------------------------------------------------------------------
# Main
# ----------------------------------------------------------------------------
if __name__ == "__main__":
    B, dim, H, W = 2, 32, 16, 16
    proj_dim = 32

    key = jax.random.PRNGKey(0)
    k_x, k_cw, k_lw, k_lb = jax.random.split(key, 4)

    x = jax.random.normal(k_x, (B, dim, H, W), dtype=jnp.float32)
    grid = build_grid((H, W)).astype(jnp.float32)                 # (2, H, W)

    # Conv2d(2 -> dim, kernel_size=1, bias=True), xavier_uniform weight, zero bias.
    fan_in, fan_out = 2, dim
    bound = (6.0 / (fan_in + fan_out)) ** 0.5
    conv_w = jax.random.uniform(k_cw, (dim, 2), jnp.float32, -bound, bound)
    conv_b = jnp.zeros((dim,), jnp.float32)

    # Linear(dim -> proj_dim), PyTorch-default uniform init range.
    lbound = (1.0 / dim) ** 0.5
    lin_w = jax.random.uniform(k_lw, (proj_dim, dim), jnp.float32, -lbound, lbound)
    lin_b = jax.random.uniform(k_lb, (proj_dim,), jnp.float32, -lbound, lbound)

    # Path 1: no proj_dim -> output is NCHW (B, dim, H, W)
    out_noproj = coordinate_position_embed(
        x, grid, conv_w, conv_b, lin_w, lin_b, has_proj=False)
    jax.block_until_ready(out_noproj)
    ref_noproj = reference(x, grid, conv_w, conv_b, lin_w, lin_b, has_proj=False)
    assert out_noproj.shape == (B, dim, H, W)
    assert jnp.allclose(out_noproj, ref_noproj, atol=1e-5, rtol=1e-5)

    # Path 2: proj_dim set -> output is (B, H*W, proj_dim)
    out_proj = coordinate_position_embed(
        x, grid, conv_w, conv_b, lin_w, lin_b, has_proj=True)
    jax.block_until_ready(out_proj)
    ref_proj = reference(x, grid, conv_w, conv_b, lin_w, lin_b, has_proj=True)
    assert out_proj.shape == (B, H * W, proj_dim)
    assert jnp.allclose(out_proj, ref_proj, atol=1e-4, rtol=1e-4)

    print("KERNEL_OK")
</pallas_src>

<mosaic_0001>
module attributes {stable_mosaic.version = 11 : i64} {
  func.func @_add_pos_kernel(%arg0: i32, %arg1: i32, %arg2: memref<2x32x256xf32, #tpu.memory_space<vmem>>, %arg3: memref<1x32x256xf32, #tpu.memory_space<vmem>>, %arg4: memref<2x32x256xf32, #tpu.memory_space<vmem>>) attributes {dimension_semantics = [#tpu.dimension_semantics<parallel>, #tpu.dimension_semantics<parallel>], iteration_bounds = array<i64: 1, 1>, scalar_prefetch = 0 : i64, scratch_operands = 0 : i64, tpu.core_type = #tpu.core_type<tc>, window_params = [{transform_indices = @transform_0, window_bounds = array<i64: 2, 32, 256>}, {transform_indices = @transform_1, window_bounds = array<i64: 1, 32, 256>}, {transform_indices = @transform_2, window_bounds = array<i64: 2, 32, 256>}]} {
    %c0 = arith.constant 0 : index
    %c0_0 = arith.constant 0 : index
    %c0_1 = arith.constant 0 : index
    %0 = vector.load %arg2[%c0, %c0_0, %c0_1] : memref<2x32x256xf32, #tpu.memory_space<vmem>>, vector<2x32x256xf32>
    %c0_2 = arith.constant 0 : index
    %c0_3 = arith.constant 0 : index
    %c0_4 = arith.constant 0 : index
    %1 = vector.load %arg3[%c0_2, %c0_3, %c0_4] : memref<1x32x256xf32, #tpu.memory_space<vmem>>, vector<1x32x256xf32>
    %2 = vector.broadcast %1 : vector<1x32x256xf32> to vector<2x32x256xf32>
    %3 = arith.addf %0, %2 : vector<2x32x256xf32>
    %c0_5 = arith.constant 0 : index
    %c0_6 = arith.constant 0 : index
    %c0_7 = arith.constant 0 : index
    %4 = vector.load %arg4[%c0_5, %c0_6, %c0_7] : memref<2x32x256xf32, #tpu.memory_space<vmem>>, vector<2x32x256xf32>
    tpu.vector_store %arg4[%c0_5, %c0_6, %c0_7], %3 {strides = array<i32>} : memref<2x32x256xf32, #tpu.memory_space<vmem>>, vector<2x32x256xf32>,
    return
  }
  func.func @transform_0(%arg0: i32, %arg1: i32) -> (i32, i32, i32) {
    %c0_i32 = arith.constant 0 : i32
    %c0_i32_0 = arith.constant 0 : i32
    return %arg0, %c0_i32, %arg1 : i32, i32, i32
  }
  func.func @transform_1(%arg0: i32, %arg1: i32) -> (i32, i32, i32) {
    %c0_i32 = arith.constant 0 : i32
    %c0_i32_0 = arith.constant 0 : i32
    %c0_i32_1 = arith.constant 0 : i32
    return %c0_i32, %c0_i32_0, %arg1 : i32, i32, i32
  }
  func.func @transform_2(%arg0: i32, %arg1: i32) -> (i32, i32, i32) {
    %c0_i32 = arith.constant 0 : i32
    %c0_i32_0 = arith.constant 0 : i32
    return %arg0, %c0_i32, %arg1 : i32, i32, i32
  }
}

</mosaic_0001>

<llo_original>
// kernel: coordinate_position_embed.1
$region0: #{coordinate_position_embed.1}
  #allocation0 [shape = 'u32[]', space=smem, size = 0x4, offset = 0x4, fixed_abs, tag = 'smem constant byte address 0x4 - core index']
  #allocation1 [shape = 'u32[144,128]{1,0:T(1,128)}', space=vmem, size = 0x12000, scoped, tag = 'internal scratch']
  %s0 = inlined_call_operand.hbm [shape: f32[2,32,256], index: 0, kind: input, shape index: {}]
  %s1 = inlined_call_operand.hbm [shape: f32[1,32,256], index: 1, kind: input, shape index: {}]
  %s2 = inlined_call_operand.hbm [shape: f32[2,32,256], index: 2, kind: output, shape index: {}]
  %s3 = sld [smem:[#allocation0]]
  $region26: #{coordinate_position_embed.1} parent=0
    _
  %s5 = ssub.s32 1, %s3
  %s6 = scalar_select 0, %s5, %s3
  $region1: #{coordinate_position_embed.1} parent=0
    #allocation2 [shape = 'u8[65536]{0}', space=vmem, size = 0x10000, scoped, tag = 'input window, operand 0, single buffered']
    #allocation3 [shape = 's32[1]{0}', space=sflag, size = 0x4, scoped, tag = 'scoped memory for coordinate_position_embed.1']
    #allocation4 [shape = 's32[1]{0}', space=sflag, size = 0x4, scoped, tag = 'scoped memory for coordinate_position_embed.1']
    #allocation5 [shape = 'u8[32768]{0}', space=vmem, size = 0x8000, scoped, tag = 'input window, operand 1, single buffered']
    #allocation6 [shape = 's32[1]{0}', space=sflag, size = 0x4, scoped, tag = 'scoped memory for coordinate_position_embed.1']
    #allocation7 [shape = 'u8[65536]{0}', space=vmem, size = 0x10000, scoped, tag = 'output window, operand 0, single buffered']
    %7 = vsyncpa [#allocation3], 0
    %8 = vsyncpa [#allocation6], 0
    %9 = vsyncpa [#allocation4], 0
    // Predicated region
    $region2: #{coordinate_position_embed.1} parent=1 // pred_check
      _
    $region3: #{coordinate_position_embed.1} parent=1 // pred_check_branch
      %11 = sbr.rel (0) target = $region5
    $region4: #{coordinate_position_embed.1} parent=1 // pred_region
      %s13 = ssub.s32 2048, 2048
      %14 = vsyncadd [#allocation3], %s13
      %s15 = sshll.u32 [#allocation2], 4
      %s16 = int_to_ptr.vmem [resolvable:$true] %s15
      %21 = dma.hbm_to_vmem [thread:$0]  %s0, 2048, %s16, [#allocation3], 256, 256, 16
    $region5: #{coordinate_position_embed.1} parent=1 // pred_fallthru
      _
    // Predicated region
    $region6: #{coordinate_position_embed.1} parent=1 // pred_check
      _
    $region7: #{coordinate_position_embed.1} parent=1 // pred_check_branch
      %23 = sbr.rel (0) target = $region9
    $region8: #{coordinate_position_embed.1} parent=1 // pred_region
      %s25 = ssub.s32 1024, 1024
      %26 = vsyncadd [#allocation6], %s25
      %s27 = sshll.u32 [#allocation5], 4
      %s28 = int_to_ptr.vmem [resolvable:$true] %s27
      %33 = dma.hbm_to_vmem [thread:$0]  %s1, 1024, %s28, [#allocation6], 256, 256, 16
    $region9: #{coordinate_position_embed.1} parent=1 // pred_fallthru
      _
    // Predicated region
    $region10: #{coordinate_position_embed.1} parent=1 // pred_check
      _
    $region11: #{coordinate_position_embed.1} parent=1 // pred_check_branch
      %35 = sbr.rel (0) target = $region13
    $region12: #{coordinate_position_embed.1} parent=1 // pred_region
      %36 = dma.done [#allocation3], 2048
    $region13: #{coordinate_position_embed.1} parent=1 // pred_fallthru
      _
    // Predicated region
    $region14: #{coordinate_position_embed.1} parent=1 // pred_check
      _
    $region15: #{coordinate_position_embed.1} parent=1 // pred_check_branch
      %38 = sbr.rel (0) target = $region17
    $region16: #{coordinate_position_embed.1} parent=1 // pred_region
      %39 = dma.done [#allocation6], 1024
    $region17: #{coordinate_position_embed.1} parent=1 // pred_fallthru
      _
    %v40 = vld [vmem:[#allocation2] sm:$0xff]
    %v41 = vld [vmem:[#allocation2 + $0x8] sm:$0xff]
    %v42 = vld [vmem:[#allocation2 + $0x10] sm:$0xff]
    %v43 = vld [vmem:[#allocation2 + $0x18] sm:$0xff]
    %v44 = vld [vmem:[#allocation2 + $0x20] sm:$0xff]
    %v45 = vld [vmem:[#allocation2 + $0x28] sm:$0xff]
    %v46 = vld [vmem:[#allocation2 + $0x30] sm:$0xff]
    %v47 = vld [vmem:[#allocation2 + $0x38] sm:$0xff]
    %v48 = vld [vmem:[#allocation2 + $0x40] sm:$0xff]
    %v49 = vld [vmem:[#allocation2 + $0x48] sm:$0xff]
    %v50 = vld [vmem:[#allocation2 + $0x50] sm:$0xff]
    %v51 = vld [vmem:[#allocation2 + $0x58] sm:$0xff]
    %v52 = vld [vmem:[#allocation2 + $0x60] sm:$0xff]
    %v53 = vld [vmem:[#allocation2 + $0x68] sm:$0xff]
    %v54 = vld [vmem:[#allocation2 + $0x70] sm:$0xff]
    %v55 = vld [vmem:[#allocation2 + $0x78] sm:$0xff]
    %v56 = vld [vmem:[#allocation5] sm:$0xff]
    %v57 = vld [vmem:[#allocation5 + $0x8] sm:$0xff]
    %v58 = vld [vmem:[#allocation5 + $0x10] sm:$0xff]
    %v59 = vld [vmem:[#allocation5 + $0x18] sm:$0xff]
    %v60 = vld [vmem:[#allocation5 + $0x20] sm:$0xff]
    %v61 = vld [vmem:[#allocation5 + $0x28] sm:$0xff]
    %v62 = vld [vmem:[#allocation5 + $0x30] sm:$0xff]
    %v63 = vld [vmem:[#allocation5 + $0x38] sm:$0xff]
    %v64 = vadd.f32 %v40, %v56
    %v65 = vadd.f32 %v41, %v57
    %v66 = vadd.f32 %v42, %v58
    %v67 = vadd.f32 %v43, %v59
    %v68 = vadd.f32 %v44, %v60
    %v69 = vadd.f32 %v45, %v61
    %v70 = vadd.f32 %v46, %v62
    %v71 = vadd.f32 %v47, %v63
    %v72 = vadd.f32 %v48, %v56
    %v73 = vadd.f32 %v49, %v57
    %v74 = vadd.f32 %v50, %v58
    %v75 = vadd.f32 %v51, %v59
    %v76 = vadd.f32 %v52, %v60
    %v77 = vadd.f32 %v53, %v61
    %v78 = vadd.f32 %v54, %v62
    %v79 = vadd.f32 %v55, %v63
    %80 = vst [vmem:[#allocation7] sm:$0xff] %v64
    %81 = vst [vmem:[#allocation7 + $0x8] sm:$0xff] %v65
    %82 = vst [vmem:[#allocation7 + $0x10] sm:$0xff] %v66
    %83 = vst [vmem:[#allocation7 + $0x18] sm:$0xff] %v67
    %84 = vst [vmem:[#allocation7 + $0x20] sm:$0xff] %v68
    %85 = vst [vmem:[#allocation7 + $0x28] sm:$0xff] %v69
    %86 = vst [vmem:[#allocation7 + $0x30] sm:$0xff] %v70
    %87 = vst [vmem:[#allocation7 + $0x38] sm:$0xff] %v71
    %88 = vst [vmem:[#allocation7 + $0x40] sm:$0xff] %v72
    %89 = vst [vmem:[#allocation7 + $0x48] sm:$0xff] %v73
    %90 = vst [vmem:[#allocation7 + $0x50] sm:$0xff] %v74
    %91 = vst [vmem:[#allocation7 + $0x58] sm:$0xff] %v75
    %92 = vst [vmem:[#allocation7 + $0x60] sm:$0xff] %v76
    %93 = vst [vmem:[#allocation7 + $0x68] sm:$0xff] %v77
    %94 = vst [vmem:[#allocation7 + $0x70] sm:$0xff] %v78
    %95 = vst [vmem:[#allocation7 + $0x78] sm:$0xff] %v79
    // Predicated region
    $region18: #{coordinate_position_embed.1} parent=1 // pred_check
      _
    $region19: #{coordinate_position_embed.1} parent=1 // pred_check_branch
      %97 = sbr.rel (0) target = $region21
    $region20: #{coordinate_position_embed.1} parent=1 // pred_region
      %s99 = ssub.s32 2048, 2048
      %100 = vsyncadd [#allocation4], %s99
      %s101 = sshll.u32 [#allocation7], 4
      %s102 = int_to_ptr.vmem [resolvable:$true] %s101
      %107 = dma.vmem_to_hbm [thread:$0]  %s102, 2048, %s2, [#allocation4], 256, 256, 16
    $region21: #{coordinate_position_embed.1} parent=1 // pred_fallthru
      _
    // Predicated region
    $region22: #{coordinate_position_embed.1} parent=1 // pred_check
      _
    $region23: #{coordinate_position_embed.1} parent=1 // pred_check_branch
      %109 = sbr.rel (0) target = $region25
    $region24: #{coordinate_position_embed.1} parent=1 // pred_region
      %110 = dma.done [#allocation4], 2048
    $region25: #{coordinate_position_embed.1} parent=1 // pred_fallthru
      _
    %111 = vsyncpa [#allocation3], 1
    %112 = vsyncpa [#allocation6], 1
    %113 = vsyncpa [#allocation4], 1

</llo_original>
